<compile_context>
chip_gen: v7x
topology: tpu7x:2x2x1
jax: 0.10.0
libtpu: 0.0.40
codegen_flags: <defaults>
</compile_context>

<pallas_src>
import functools

import jax
import jax.numpy as jnp
from jax import lax
from jax.experimental import pallas as pl
from jax.experimental.pallas import tpu as pltpu


def _self_attention_kernel(x_ref,                 # (1, C, Np)   bf16
                           wk_ref, bk_ref,        # (Ch, C) bf16, (Ch, 1) f32
                           wqv_ref, bqv_ref,      # (2Ch, C) bf16, (2Ch, 1) f32
                           wo_ref, bo_ref,        # (C, Ch) bf16, (C, 1) f32  ((1+gamma) folded in)
                           out_ref,               # (1, C, Np)   f32 (resident over q tiles)
                           attn_ref,              # (1, TQ, Np)  attn dtype (bf16 default)
                           k_scr,                 # VMEM (Ch, Np) bf16
                           acc_scr,               # VMEM (Ch, Np) f32
                           *, ch, tq, n_valid, n_pad):
    qi = pl.program_id(1)

    # ---- per-batch init: project K once (bf16 MXU matmul), zero the PV acc.
    @pl.when(qi == 0)
    def _():
        x = x_ref[0]                                                  # (C, Np) bf16
        k = jnp.dot(wk_ref[...], x,
                    preferred_element_type=jnp.float32) + bk_ref[...]
        k_scr[...] = k.astype(k_scr.dtype)
        acc_scr[...] = jnp.zeros_like(acc_scr)

    # ---- per-tile Q/V projection: one fused (2Ch, C) x (C, TQ) bf16 matmul.
    q_start = pl.multiple_of(qi * tq, tq)
    x_t = x_ref[0, :, pl.ds(q_start, tq)]                             # (C, TQ) bf16
    qv = jnp.dot(wqv_ref[...], x_t,
                 preferred_element_type=jnp.float32) + bqv_ref[...]   # (2Ch, TQ) f32
    q_t = qv[0:ch, :].astype(jnp.bfloat16)                            # (Ch, TQ)
    v_t = qv[ch:2 * ch, :]                                            # (Ch, TQ) f32

    # logits[i, j] = sum_c q[c, i] * k[c, j]  -- bf16 operands, f32 accumulate.
    logits = lax.dot_general(q_t, k_scr[...], (((0,), (0,)), ((), ())),
                             preferred_element_type=jnp.float32)      # (TQ, Np)

    if n_pad != n_valid:  # static: only traced when N was padded to 128-mult.
        col = lax.broadcasted_iota(jnp.int32, (tq, n_pad), 1)
        logits = jnp.where(col < n_valid, logits, -1e30)

    # Softmax in f32; divide via the EUP reciprocal (approx => rows sum to
    # 1 +/- ~1e-3, within tolerance for downstream use of the attention map).
    m = jnp.max(logits, axis=-1, keepdims=True)
    e = jnp.exp(logits - m)
    attn = e * pl.reciprocal(jnp.sum(e, axis=-1, keepdims=True), approx=True)
    attn_ref[0] = attn.astype(attn_ref.dtype)                         # lane-dense slab

    if n_pad != n_valid:  # padded query rows must not contribute to the PV sum.
        qidx = lax.broadcasted_iota(jnp.int32, (ch, tq), 1) + q_start
        v_t = jnp.where(qidx < n_valid, v_t, 0.0)

    # torch: out = value @ attention_map  =>  out[c, j] = sum_i v[c, i]*attn[i, j]
    # (reduction over the query index i -> accumulate across query tiles).
    acc_scr[...] += jnp.dot(v_t.astype(jnp.bfloat16), attn.astype(jnp.bfloat16),
                            preferred_element_type=jnp.float32)       # (Ch, Np)

    # ---- per-batch finalize: output 1x1 conv ((1+gamma) already in wo/bo).
    @pl.when(qi == pl.num_programs(1) - 1)
    def _():
        out_ref[0] = jnp.dot(wo_ref[...], acc_scr[...].astype(jnp.bfloat16),
                             preferred_element_type=jnp.float32) + bo_ref[...]


def _default_vmem_limit_bytes():
    cap = 64 * 1024 * 1024
    try:
        cap = int(getattr(pltpu.get_tpu_info(), "vmem_capacity_bytes", cap))
    except Exception:
        pass
    # Leave headroom below physical VMEM (v7x: 64 MiB -> ~56 MiB; v5e/v6e: 128
    # MiB -> cap at 100 MiB).
    return max(32 * 1024 * 1024, min(cap - 8 * 1024 * 1024, 100 * 1024 * 1024))


def self_attention_forward(x_nchw, params, *, block_q=128,
                           attn_dtype=jnp.bfloat16,
                           matmul_dtype=jnp.bfloat16,
                           vmem_limit_bytes=None):
    """x_nchw: (B, C, H, W) f32.  Returns (out (B,C,H,W) f32, attn (B,N,N))."""
    B, C, H, W = x_nchw.shape
    Ch = params["wq"].shape[0]
    N = H * W

    # Pad N up to a lane multiple (128) instead of blowing the tile up to N.
    N_pad = ((N + 127) // 128) * 128
    if block_q % 128 != 0:
        block_q = 128
    block_q = min(block_q, N_pad)
    if N_pad % block_q != 0:
        block_q = 128
    n_q = N_pad // block_q

    # Channel-major flattening: NCHW -> (B, C, N_pad).  No wrapper transposes;
    # both kernel outputs are lane-dense (last dim = N_pad, multiple of 128).
    x_cn = x_nchw.reshape(B, C, N).astype(matmul_dtype)
    if N_pad != N:
        x_cn = jnp.pad(x_cn, ((0, 0), (0, 0), (0, N_pad - N)))

    # K projection weights; fused Q|V projection weights.
    wk = params["wk"].astype(matmul_dtype)                                   # (Ch, C)
    bk = params["bk"].reshape(Ch, 1).astype(jnp.float32)
    wqv = jnp.concatenate([params["wq"], params["wv"]],
                          axis=0).astype(matmul_dtype)                       # (2Ch, C)
    bqv = jnp.concatenate([params["bq"], params["bv"]],
                          axis=0).reshape(2 * Ch, 1).astype(jnp.float32)
    # Fold the (1 + gamma) residual scale into the tiny output-proj weights:
    # (1+gamma)*(wo@acc + bo) == ((1+gamma)*wo)@acc + (1+gamma)*bo.
    scale = (1.0 + params["gamma"][0]).astype(jnp.float32)
    wo = (params["wo"] * scale).astype(matmul_dtype)                         # (C, Ch)
    bo = (params["bo"] * scale).reshape(C, 1).astype(jnp.float32)

    if vmem_limit_bytes is None:
        vmem_limit_bytes = _default_vmem_limit_bytes()

    kernel = functools.partial(_self_attention_kernel, ch=Ch, tq=block_q,
                               n_valid=N, n_pad=N_pad)

    # TODO(synk): on v7x with B == 1 only one TensorCore is used (B is the only
    # "parallel" grid axis); splitting the query axis across cores would need a
    # cross-core reduction of the (Ch, N) accumulator.
    out_cn, attn = pl.pallas_call(
        kernel,
        out_shape=(
            jax.ShapeDtypeStruct((B, C, N_pad), jnp.float32),
            jax.ShapeDtypeStruct((B, N_pad, N_pad), attn_dtype),
        ),
        grid=(B, n_q),
        in_specs=[
            pl.BlockSpec((1, C, N_pad), lambda b, q: (b, 0, 0)),    # x (resident per batch)
            pl.BlockSpec((Ch, C), lambda b, q: (0, 0)),             # wk
            pl.BlockSpec((Ch, 1), lambda b, q: (0, 0)),             # bk
            pl.BlockSpec((2 * Ch, C), lambda b, q: (0, 0)),         # fused wq|wv
            pl.BlockSpec((2 * Ch, 1), lambda b, q: (0, 0)),         # fused bq|bv
            pl.BlockSpec((C, Ch), lambda b, q: (0, 0)),             # wo (scaled)
            pl.BlockSpec((C, 1), lambda b, q: (0, 0)),              # bo (scaled)
        ],
        out_specs=(
            pl.BlockSpec((1, C, N_pad), lambda b, q: (b, 0, 0)),        # acc over q tiles
            pl.BlockSpec((1, block_q, N_pad), lambda b, q: (b, q, 0)),  # attn slab per step
        ),
        scratch_shapes=[
            pltpu.VMEM((Ch, N_pad), jnp.bfloat16),   # K, computed once per batch
            pltpu.VMEM((Ch, N_pad), jnp.float32),    # PV accumulator
        ],
        compiler_params=pltpu.CompilerParams(
            dimension_semantics=("parallel", "arbitrary"),
            vmem_limit_bytes=int(vmem_limit_bytes),
        ),
    )(x_cn, wk, bk, wqv, bqv, wo, bo)

    if N_pad != N:
        out_cn = out_cn[:, :, :N]
        attn = attn[:, :N, :N]
    return out_cn.reshape(B, C, H, W), attn


def init_params(key, in_channels, reduction_ratio=8):
    C = in_channels
    Ch = C // reduction_ratio
    ks = jax.random.split(key, 9)
    return {
        # Conv2d(C, Ch, 1) weights (out, in, 1, 1) stored squeezed as (out, in)
        "wq": 0.1 * jax.random.normal(ks[0], (Ch, C), jnp.float32),
        "bq": 0.1 * jax.random.normal(ks[1], (Ch,), jnp.float32),
        "wk": 0.1 * jax.random.normal(ks[2], (Ch, C), jnp.float32),
        "bk": 0.1 * jax.random.normal(ks[3], (Ch,), jnp.float32),
        "wv": 0.1 * jax.random.normal(ks[4], (Ch, C), jnp.float32),
        "bv": 0.1 * jax.random.normal(ks[5], (Ch,), jnp.float32),
        "wo": 0.1 * jax.random.normal(ks[6], (C, Ch), jnp.float32),
        "bo": 0.1 * jax.random.normal(ks[7], (C,), jnp.float32),
        "gamma": jax.random.normal(ks[8], (1,), jnp.float32),  # nn.Parameter(torch.randn(1))
    }


def reference_forward(x_nchw, params):
    """Pure-JAX f32 reference mirroring the PyTorch module exactly."""
    B, C, H, W = x_nchw.shape
    N = H * W
    x = x_nchw.reshape(B, C, N)                                  # (B, C, N)

    def proj(w, b):  # 1x1 conv over channels
        return jnp.einsum("oc,bcn->bon", w, x) + b.reshape(1, -1, 1)

    q = proj(params["wq"], params["bq"]).transpose(0, 2, 1)      # (B, N, Ch)
    k = proj(params["wk"], params["bk"])                         # (B, Ch, N)
    v = proj(params["wv"], params["bv"])                         # (B, Ch, N)
    logits = jnp.einsum("bnc,bcm->bnm", q, k)                    # (B, N, N)
    attn = jax.nn.softmax(logits, axis=-1)
    out = jnp.einsum("bck,bkj->bcj", v, attn)                    # (B, Ch, N)
    out = jnp.einsum("oc,bcn->bon", params["wo"], out) + params["bo"].reshape(1, -1, 1)
    out = out.reshape(B, C, H, W)
    return out + params["gamma"][0] * out, attn


if __name__ == "__main__":
    B, C, H, W = 2, 32, 16, 16          # N = 256 -> two query tiles of 128
    reduction_ratio = 8

    key = jax.random.PRNGKey(0)
    kx, kp = jax.random.split(key)
    x = jax.random.normal(kx, (B, C, H, W), jnp.float32)
    params = init_params(kp, C, reduction_ratio)

    fwd = jax.jit(functools.partial(self_attention_forward, block_q=128))
    out, attn = fwd(x, params)
    out = jax.block_until_ready(out)
    attn = jax.block_until_ready(attn)

    out_ref, attn_ref = reference_forward(x, params)
    assert out.shape == (B, C, H, W)
    assert attn.shape == (B, H * W, H * W)
    # bf16 matmul operands (f32 accumulation) + bf16 attn storage vs f32 ref.
    assert jnp.allclose(out, out_ref, atol=3e-2, rtol=3e-2), \
        float(jnp.max(jnp.abs(out - out_ref)))
    assert jnp.allclose(attn.astype(jnp.float32), attn_ref, atol=1.5e-2, rtol=1.5e-2), \
        float(jnp.max(jnp.abs(attn.astype(jnp.float32) - attn_ref)))

    print("KERNEL_OK")
</pallas_src>

<mosaic_0001>
module attributes {stable_mosaic.version = 11 : i64} {
  func.func @_self_attention_kernel(%arg0: i32, %arg1: i32, %arg2: memref<1x32x256xbf16, #tpu.memory_space<vmem>>, %arg3: memref<4x32xbf16, #tpu.memory_space<vmem>>, %arg4: memref<4x1xf32, #tpu.memory_space<vmem>>, %arg5: memref<8x32xbf16, #tpu.memory_space<vmem>>, %arg6: memref<8x1xf32, #tpu.memory_space<vmem>>, %arg7: memref<32x4xbf16, #tpu.memory_space<vmem>>, %arg8: memref<32x1xf32, #tpu.memory_space<vmem>>, %arg9: memref<1x32x256xf32, #tpu.memory_space<vmem>>, %arg10: memref<1x128x256xbf16, #tpu.memory_space<vmem>>, %arg11: memref<4x256xbf16, #tpu.memory_space<vmem>>, %arg12: memref<4x256xf32, #tpu.memory_space<vmem>>) attributes {dimension_semantics = [#tpu.dimension_semantics<parallel>, #tpu.dimension_semantics<arbitrary>], iteration_bounds = array<i64: 2, 2>, scalar_prefetch = 0 : i64, scratch_operands = 2 : i64, tpu.core_type = #tpu.core_type<tc>, window_params = [{transform_indices = @transform_0, window_bounds = array<i64: 1, 32, 256>}, {pipeline_mode = #tpu.pipeline_mode<synchronous>, transform_indices = @transform_1, window_bounds = array<i64: 4, 32>}, {pipeline_mode = #tpu.pipeline_mode<synchronous>, transform_indices = @transform_2, window_bounds = array<i64: 4, 1>}, {pipeline_mode = #tpu.pipeline_mode<synchronous>, transform_indices = @transform_3, window_bounds = array<i64: 8, 32>}, {pipeline_mode = #tpu.pipeline_mode<synchronous>, transform_indices = @transform_4, window_bounds = array<i64: 8, 1>}, {pipeline_mode = #tpu.pipeline_mode<synchronous>, transform_indices = @transform_5, window_bounds = array<i64: 32, 4>}, {pipeline_mode = #tpu.pipeline_mode<synchronous>, transform_indices = @transform_6, window_bounds = array<i64: 32, 1>}, {transform_indices = @transform_7, window_bounds = array<i64: 1, 32, 256>}, {transform_indices = @transform_8, window_bounds = array<i64: 1, 128, 256>}]} {
    %c0_i32 = arith.constant 0 : i32
    %0 = arith.cmpi eq, %arg1, %c0_i32 : i32
    %1 = arith.extui %0 : i1 to i32
    %c0_i32_0 = arith.constant 0 : i32
    %2 = arith.cmpi ne, %1, %c0_i32_0 : i32
    scf.if %2 {
      %c0_20 = arith.constant 0 : index
      %c0_21 = arith.constant 0 : index
      %c0_22 = arith.constant 0 : index
      %41 = vector.load %arg2[%c0_20, %c0_21, %c0_22] : memref<1x32x256xbf16, #tpu.memory_space<vmem>>, vector<1x32x256xbf16>
      %42 = vector.shape_cast %41 : vector<1x32x256xbf16> to vector<32x256xbf16>
      %c0_23 = arith.constant 0 : index
      %c0_24 = arith.constant 0 : index
      %43 = vector.load %arg3[%c0_23, %c0_24] : memref<4x32xbf16, #tpu.memory_space<vmem>>, vector<4x32xbf16>
      %cst_25 = arith.constant dense<0.000000e+00> : vector<4x256xf32>
      %44 = tpu.matmul %43, %42, %cst_25 {dimension_numbers = #tpu.dot_dimension_numbers<[1], [0], [0], [1], [0, 0, 1, 1], [], []>} : vector<4x32xbf16>, vector<32x256xbf16>, vector<4x256xf32> -> vector<4x256xf32>
      %c0_26 = arith.constant 0 : index
      %c0_27 = arith.constant 0 : index
      %45 = vector.load %arg4[%c0_26, %c0_27] : memref<4x1xf32, #tpu.memory_space<vmem>>, vector<4x1xf32>
      %46 = vector.broadcast %45 : vector<4x1xf32> to vector<4x256xf32>
      %47 = arith.addf %44, %46 : vector<4x256xf32>
      %48 = arith.truncf %47 : vector<4x256xf32> to vector<4x256xbf16>
      %c0_28 = arith.constant 0 : index
      %c0_29 = arith.constant 0 : index
      %49 = vector.load %arg11[%c0_28, %c0_29] : memref<4x256xbf16, #tpu.memory_space<vmem>>, vector<4x256xbf16>
      tpu.vector_store %arg11[%c0_28, %c0_29], %48 {strides = array<i32>} : memref<4x256xbf16, #tpu.memory_space<vmem>>, vector<4x256xbf16>,
      %cst_30 = arith.constant 0.000000e+00 : f32
      %50 = vector.broadcast %cst_30 : f32 to vector<4x256xf32>
      %c0_31 = arith.constant 0 : index
      %c0_32 = arith.constant 0 : index
      %51 = vector.load %arg12[%c0_31, %c0_32] : memref<4x256xf32, #tpu.memory_space<vmem>>, vector<4x256xf32>
      tpu.vector_store %arg12[%c0_31, %c0_32], %50 {strides = array<i32>} : memref<4x256xf32, #tpu.memory_space<vmem>>, vector<4x256xf32>,
    } else {
    }
    %c128_i32 = arith.constant 128 : i32
    %3 = arith.muli %arg1, %c128_i32 : i32
    %4 = tpu.assume_multiple %3, 128 : i32
    %c0 = arith.constant 0 : index
    %c0_1 = arith.constant 0 : index
    %5 = arith.index_cast %4 : i32 to index
    %6 = vector.load %arg2[%c0, %c0_1, %5] : memref<1x32x256xbf16, #tpu.memory_space<vmem>>, vector<1x32x128xbf16>
    %7 = vector.shape_cast %6 : vector<1x32x128xbf16> to vector<32x128xbf16>
    %c0_2 = arith.constant 0 : index
    %c0_3 = arith.constant 0 : index
    %8 = vector.load %arg5[%c0_2, %c0_3] : memref<8x32xbf16, #tpu.memory_space<vmem>>, vector<8x32xbf16>
    %cst = arith.constant dense<0.000000e+00> : vector<8x128xf32>
    %9 = tpu.matmul %8, %7, %cst {dimension_numbers = #tpu.dot_dimension_numbers<[1], [0], [0], [1], [0, 0, 1, 1], [], []>} : vector<8x32xbf16>, vector<32x128xbf16>, vector<8x128xf32> -> vector<8x128xf32>
    %c0_4 = arith.constant 0 : index
    %c0_5 = arith.constant 0 : index
    %10 = vector.load %arg6[%c0_4, %c0_5] : memref<8x1xf32, #tpu.memory_space<vmem>>, vector<8x1xf32>
    %11 = vector.broadcast %10 : vector<8x1xf32> to vector<8x128xf32>
    %12 = arith.addf %9, %11 : vector<8x128xf32>
    %13 = vector.extract_strided_slice %12 {offsets = [0, 0], sizes = [4, 128], strides = [1, 1]} : vector<8x128xf32> to vector<4x128xf32>
    %14 = arith.truncf %13 : vector<4x128xf32> to vector<4x128xbf16>
    %15 = vector.extract_strided_slice %12 {offsets = [4, 0], sizes = [4, 128], strides = [1, 1]} : vector<8x128xf32> to vector<4x128xf32>
    %c0_6 = arith.constant 0 : index
    %c0_7 = arith.constant 0 : index
    %16 = vector.load %arg11[%c0_6, %c0_7] : memref<4x256xbf16, #tpu.memory_space<vmem>>, vector<4x256xbf16>
    %cst_8 = arith.constant dense<0.000000e+00> : vector<128x256xf32>
    %17 = tpu.matmul %14, %16, %cst_8 {dimension_numbers = #tpu.dot_dimension_numbers<[0], [0], [1], [1], [0, 1, 1, 1], [], []>} : vector<4x128xbf16>, vector<4x256xbf16>, vector<128x256xf32> -> vector<128x256xf32>
    %cst_9 = arith.constant dense<0xFF800000> : vector<128xf32>
    %18 = vector.multi_reduction <maximumf>, %17, %cst_9 [1] : vector<128x256xf32> to vector<128xf32>
    %19 = vector.shape_cast %18 : vector<128xf32> to vector<128x1xf32>
    %20 = vector.broadcast %19 : vector<128x1xf32> to vector<128x256xf32>
    %21 = arith.subf %17, %20 : vector<128x256xf32>
    %22 = math.exp %21 : vector<128x256xf32>
    %cst_10 = arith.constant dense<0.000000e+00> : vector<128xf32>
    %23 = vector.multi_reduction <add>, %22, %cst_10 [1] : vector<128x256xf32> to vector<128xf32>
    %24 = vector.shape_cast %23 : vector<128xf32> to vector<128x1xf32>
    %25 = tpu.reciprocal %24 {approx = true} : vector<128x1xf32> -> vector<128x1xf32>
    %26 = vector.broadcast %25 : vector<128x1xf32> to vector<128x256xf32>
    %27 = arith.mulf %22, %26 : vector<128x256xf32>
    %28 = arith.truncf %27 : vector<128x256xf32> to vector<128x256xbf16>
    %c0_11 = arith.constant 0 : index
    %c0_12 = arith.constant 0 : index
    %c0_13 = arith.constant 0 : index
    %29 = vector.load %arg10[%c0_11, %c0_12, %c0_13] : memref<1x128x256xbf16, #tpu.memory_space<vmem>>, vector<1x128x256xbf16>
    %30 = vector.shape_cast %29 : vector<1x128x256xbf16> to vector<128x256xbf16>
    %31 = vector.shape_cast %28 : vector<128x256xbf16> to vector<1x128x256xbf16>
    tpu.vector_store %arg10[%c0_11, %c0_12, %c0_13], %31 {strides = array<i32>} : memref<1x128x256xbf16, #tpu.memory_space<vmem>>, vector<1x128x256xbf16>,
    %c0_14 = arith.constant 0 : index
    %c0_15 = arith.constant 0 : index
    %32 = vector.load %arg12[%c0_14, %c0_15] : memref<4x256xf32, #tpu.memory_space<vmem>>, vector<4x256xf32>
    %33 = arith.truncf %15 : vector<4x128xf32> to vector<4x128xbf16>
    %34 = arith.truncf %27 : vector<128x256xf32> to vector<128x256xbf16>
    %cst_16 = arith.constant dense<0.000000e+00> : vector<4x256xf32>
    %35 = tpu.matmul %33, %34, %cst_16 {dimension_numbers = #tpu.dot_dimension_numbers<[1], [0], [0], [1], [0, 0, 1, 1], [], []>} : vector<4x128xbf16>, vector<128x256xbf16>, vector<4x256xf32> -> vector<4x256xf32>
    %36 = arith.addf %32, %35 : vector<4x256xf32>
    %c0_17 = arith.constant 0 : index
    %c0_18 = arith.constant 0 : index
    %37 = vector.load %arg12[%c0_17, %c0_18] : memref<4x256xf32, #tpu.memory_space<vmem>>, vector<4x256xf32>
    tpu.vector_store %arg12[%c0_17, %c0_18], %36 {strides = array<i32>} : memref<4x256xf32, #tpu.memory_space<vmem>>, vector<4x256xf32>,
    %c1_i32 = arith.constant 1 : i32
    %38 = arith.cmpi eq, %arg1, %c1_i32 : i32
    %39 = arith.extui %38 : i1 to i32
    %c0_i32_19 = arith.constant 0 : i32
    %40 = arith.cmpi ne, %39, %c0_i32_19 : i32
    scf.if %40 {
      %c0_20 = arith.constant 0 : index
      %c0_21 = arith.constant 0 : index
      %41 = vector.load %arg7[%c0_20, %c0_21] : memref<32x4xbf16, #tpu.memory_space<vmem>>, vector<32x4xbf16>
      %c0_22 = arith.constant 0 : index
      %c0_23 = arith.constant 0 : index
      %42 = vector.load %arg12[%c0_22, %c0_23] : memref<4x256xf32, #tpu.memory_space<vmem>>, vector<4x256xf32>
      %43 = arith.truncf %42 : vector<4x256xf32> to vector<4x256xbf16>
      %cst_24 = arith.constant dense<0.000000e+00> : vector<32x256xf32>
      %44 = tpu.matmul %41, %43, %cst_24 {dimension_numbers = #tpu.dot_dimension_numbers<[1], [0], [0], [1], [0, 0, 1, 1], [], []>} : vector<32x4xbf16>, vector<4x256xbf16>, vector<32x256xf32> -> vector<32x256xf32>
      %c0_25 = arith.constant 0 : index
      %c0_26 = arith.constant 0 : index
      %45 = vector.load %arg8[%c0_25, %c0_26] : memref<32x1xf32, #tpu.memory_space<vmem>>, vector<32x1xf32>
      %46 = vector.broadcast %45 : vector<32x1xf32> to vector<32x256xf32>
      %47 = arith.addf %44, %46 : vector<32x256xf32>
      %c0_27 = arith.constant 0 : index
      %c0_28 = arith.constant 0 : index
      %c0_29 = arith.constant 0 : index
      %48 = vector.load %arg9[%c0_27, %c0_28, %c0_29] : memref<1x32x256xf32, #tpu.memory_space<vmem>>, vector<1x32x256xf32>
      %49 = vector.shape_cast %48 : vector<1x32x256xf32> to vector<32x256xf32>
      %50 = vector.shape_cast %47 : vector<32x256xf32> to vector<1x32x256xf32>
      tpu.vector_store %arg9[%c0_27, %c0_28, %c0_29], %50 {strides = array<i32>} : memref<1x32x256xf32, #tpu.memory_space<vmem>>, vector<1x32x256xf32>,
    } else {
    }
    return
  }
  func.func @transform_0(%arg0: i32, %arg1: i32) -> (i32, i32, i32) {
    %c0_i32 = arith.constant 0 : i32
    %c0_i32_0 = arith.constant 0 : i32
    %c0_i32_1 = arith.constant 0 : i32
    return %arg0, %c0_i32, %c0_i32_0 : i32, i32, i32
  }
  func.func @transform_1(%arg0: i32, %arg1: i32) -> (i32, i32) {
    %c0_i32 = arith.constant 0 : i32
    %c0_i32_0 = arith.constant 0 : i32
    %c0_i32_1 = arith.constant 0 : i32
    return %c0_i32, %c0_i32_0 : i32, i32
  }
  func.func @transform_2(%arg0: i32, %arg1: i32) -> (i32, i32) {
    %c0_i32 = arith.constant 0 : i32
    %c0_i32_0 = arith.constant 0 : i32
    %c0_i32_1 = arith.constant 0 : i32
    return %c0_i32, %c0_i32_0 : i32, i32
  }
  func.func @transform_3(%arg0: i32, %arg1: i32) -> (i32, i32) {
    %c0_i32 = arith.constant 0 : i32
    %c0_i32_0 = arith.constant 0 : i32
    %c0_i32_1 = arith.constant 0 : i32
    return %c0_i32, %c0_i32_0 : i32, i32
  }
  func.func @transform_4(%arg0: i32, %arg1: i32) -> (i32, i32) {
    %c0_i32 = arith.constant 0 : i32
    %c0_i32_0 = arith.constant 0 : i32
    %c0_i32_1 = arith.constant 0 : i32
    return %c0_i32, %c0_i32_0 : i32, i32
  }
  func.func @transform_5(%arg0: i32, %arg1: i32) -> (i32, i32) {
    %c0_i32 = arith.constant 0 : i32
    %c0_i32_0 = arith.constant 0 : i32
    %c0_i32_1 = arith.constant 0 : i32
    return %c0_i32, %c0_i32_0 : i32, i32
  }
  func.func @transform_6(%arg0: i32, %arg1: i32) -> (i32, i32) {
    %c0_i32 = arith.constant 0 : i32
    %c0_i32_0 = arith.constant 0 : i32
    %c0_i32_1 = arith.constant 0 : i32
    return %c0_i32, %c0_i32_0 : i32, i32
  }
  func.func @transform_7(%arg0: i32, %arg1: i32) -> (i32, i32, i32) {
    %c0_i32 = arith.constant 0 : i32
    %c0_i32_0 = arith.constant 0 : i32
    %c0_i32_1 = arith.constant 0 : i32
    return %arg0, %c0_i32, %c0_i32_0 : i32, i32, i32
  }
  func.func @transform_8(%arg0: i32, %arg1: i32) -> (i32, i32, i32) {
    %c0_i32 = arith.constant 0 : i32
    %c0_i32_0 = arith.constant 0 : i32
    return %arg0, %arg1, %c0_i32 : i32, i32, i32
  }
}

</mosaic_0001>

<llo_original>
// kernel: self_attention_forward.1
$region0: #{self_attention_forward.1}
  #allocation0 [shape = 'u32[]', space=smem, size = 0x4, offset = 0x4, fixed_abs, tag = 'smem constant byte address 0x4 - core index']
  #allocation1 [shape = 'u32[144,128]{1,0:T(1,128)}', space=vmem, size = 0x12000, scoped, tag = 'internal scratch']
  #allocation2 [shape = 'bf16[4,256]{1,0:T(4,128)(2,1)}', space=vmem, size = 0x800, scoped, tag = 'scratch operand']
  #allocation3 [shape = 'f32[4,256]{1,0:T(4,128)}', space=vmem, size = 0x1000, scoped, tag = 'scratch operand']
  %s0 = inlined_call_operand.vmem [shape: bf16[2,32,256], index: 0, kind: input, shape index: {}]
  %s1 = inlined_call_operand.vmem [shape: bf16[4,32], index: 1, kind: input, shape index: {}]
  %s2 = inlined_call_operand.vmem [shape: f32[4,1], index: 2, kind: input, shape index: {}]
  %s3 = inlined_call_operand.vmem [shape: bf16[8,32], index: 3, kind: input, shape index: {}]
  %s4 = inlined_call_operand.vmem [shape: f32[8,1], index: 4, kind: input, shape index: {}]
  %s5 = inlined_call_operand.vmem [shape: bf16[32,4], index: 5, kind: input, shape index: {}]
  %s6 = inlined_call_operand.vmem [shape: f32[32,1], index: 6, kind: input, shape index: {}]
  %s7 = inlined_call_operand.vmem [shape: f32[2,32,256], index: 7, kind: output, shape index: {0}]
  %s8 = inlined_call_operand.hbm [shape: bf16[2,256,256], index: 8, kind: output, shape index: {1}]
  %9 = xla_tuple %s7, %s8
  %s10 = sld [smem:[#allocation0]]
  $region77: #{self_attention_forward.1} parent=0
    _
  %s12 = ssub.s32 1, %s10
  %s13 = scalar_select 0, %s12, %s10
  $region1: #{self_attention_forward.1} parent=0
    #allocation4 [shape = 'u8[131072]{0}', space=vmem, size = 0x20000, scoped, tag = 'output window, operand 1']
    #allocation5 [shape = 's32[2]{0}', space=sflag, size = 0x8, scoped, tag = 'scoped memory for self_attention_forward.1']
    %14 = vsyncpa [#allocation5], 0
    %s15 = scalar_lea.sflag [#allocation5], 1
    %16 = vsyncpa %s15, 0
    loop: start=0, step=1, limit=6
    $region2: #{self_attention_forward.1} parent=1 // loop_pre_header
      _
    $region3: #{self_attention_forward.1} parent=1 // loop_header
      %s18 = sphi 0, %s22
      %p19 = scmp.ge.s32.totalorder %s18, 6
      %s25 = sphi 0, %s37
      %s26 = sphi 0, %s33
      %s27 = sphi 0, %s25
      %s28 = sphi 0, %s26
      %s29 = sphi 0, %s27
      %s30 = sphi 0, %s28
      %s40 = sphi 0, %s42
      %s43 = sphi 0, %s40
      %s44 = sphi 0, %s43
      %s60 = sphi 0, %s44
      %s64 = sphi 0, %s64
      %s66 = sphi 0, %s64
      %s67 = sphi 0, %s66
      %s81 = sphi 0, %s67
      %s85 = sphi 0, %s85
      %s87 = sphi 0, %s85
      %s88 = sphi 0, %s87
      %s102 = sphi 0, %s88
      %s106 = sphi 0, %s106
      %s108 = sphi 0, %s106
      %s109 = sphi 0, %s108
      %s123 = sphi 0, %s109
      %s127 = sphi 0, %s127
      %s129 = sphi 0, %s127
      %s130 = sphi 0, %s129
      %s144 = sphi 0, %s130
      %s148 = sphi 0, %s148
      %s150 = sphi 0, %s148
      %s151 = sphi 0, %s150
      %s165 = sphi 0, %s151
      %s169 = sphi 0, %s169
      %s171 = sphi 0, %s169
      %s172 = sphi 0, %s171
      %s186 = sphi 0, %s172
      %s192 = sphi 0, %s194
      %s195 = sphi 0, %s192
      %s196 = sphi 0, %s195
      %s212 = sphi 0, %s196
      %s220 = sphi 0, %s222
      %s223 = sphi 0, %s220
      %s224 = sphi 0, %s223
      %s240 = sphi 0, %s224
    $region4: #{self_attention_forward.1} parent=1 // loop_header_branch
      %21 = sbr.rel (%p19) target = $region8
    $region5: #{self_attention_forward.1} parent=1 // loop_body
      %s23 = ssub.s32 %s18, 1
      %s24 = ssub.s32 %s18, 2
      %s31 = sadd.s32 1, %s26
      %p32 = scmp.ge.s32.totalorder %s31, 2
      %s33 = scalar_select %p32, 0, %s31
      %s34 = sadd.s32 1, %s25
      %s35 = scalar_select %p32, %s34, %s25
      %p36 = scmp.ge.s32.totalorder %s35, 2
      %s37 = scalar_select %p36, 0, %s35
      %s38 = ssub.s32 %s25, %s37
      %p39 = scmp.eq.s32.totalorder %s38, 0
      %s41 = sadd.s32 %s40, 1
      %s42 = scalar_select %p39, %s40, %s41
      %p45 = pneg %p39
      %p46 = scmp.eq.s32.totalorder %s18, 3
      %p47 = por %p45, %p46
      %p48 = scmp.ne.s32.totalorder %s40, %s43
      %p49 = scmp.eq.s32.totalorder %s18, 0
      %p50 = por %p48, %p49
      %p51 = scmp.ne.s32.totalorder %s40, %s43
      %p52 = scmp.eq.s32.totalorder %s23, 3
      %p53 = por %p51, %p52
      %p54 = scmp.ne.s32.totalorder %s43, %s44
      %p55 = scmp.eq.s32.totalorder %s23, 0
      %p56 = por %p54, %p55
      %p57 = scmp.ne.s32.totalorder %s43, %s44
      %p58 = scmp.eq.s32.totalorder %s24, 3
      %p59 = por %p57, %p58
      %p61 = scmp.ne.s32.totalorder %s44, %s60
      %p62 = scmp.eq.s32.totalorder %s24, 0
      %p63 = por %p61, %p62
      %s65 = sadd.s32 %s64, 1
      %p68 = scmp.eq.s32.totalorder %s18, 3
      %p69 = scmp.ne.s32.totalorder %s64, %s66
      %p70 = scmp.eq.s32.totalorder %s18, 0
      %p71 = por %p69, %p70
      %p72 = scmp.ne.s32.totalorder %s64, %s66
      %p73 = scmp.eq.s32.totalorder %s23, 3
      %p74 = por %p72, %p73
      %p75 = scmp.ne.s32.totalorder %s66, %s67
      %p76 = scmp.eq.s32.totalorder %s23, 0
      %p77 = por %p75, %p76
      %p78 = scmp.ne.s32.totalorder %s66, %s67
      %p79 = scmp.eq.s32.totalorder %s24, 3
      %p80 = por %p78, %p79
      %p82 = scmp.ne.s32.totalorder %s67, %s81
      %p83 = scmp.eq.s32.totalorder %s24, 0
      %p84 = por %p82, %p83
      %s86 = sadd.s32 %s85, 1
      %p89 = scmp.eq.s32.totalorder %s18, 3
      %p90 = scmp.ne.s32.totalorder %s85, %s87
      %p91 = scmp.eq.s32.totalorder %s18, 0
      %p92 = por %p90, %p91
      %p93 = scmp.ne.s32.totalorder %s85, %s87
      %p94 = scmp.eq.s32.totalorder %s23, 3
      %p95 = por %p93, %p94
      %p96 = scmp.ne.s32.totalorder %s87, %s88
      %p97 = scmp.eq.s32.totalorder %s23, 0
      %p98 = por %p96, %p97
      %p99 = scmp.ne.s32.totalorder %s87, %s88
      %p100 = scmp.eq.s32.totalorder %s24, 3
      %p101 = por %p99, %p100
      %p103 = scmp.ne.s32.totalorder %s88, %s102
      %p104 = scmp.eq.s32.totalorder %s24, 0
      %p105 = por %p103, %p104
      %s107 = sadd.s32 %s106, 1
      %p110 = scmp.eq.s32.totalorder %s18, 3
      %p111 = scmp.ne.s32.totalorder %s106, %s108
      %p112 = scmp.eq.s32.totalorder %s18, 0
      %p113 = por %p111, %p112
      %p114 = scmp.ne.s32.totalorder %s106, %s108
      %p115 = scmp.eq.s32.totalorder %s23, 3
      %p116 = por %p114, %p115
      %p117 = scmp.ne.s32.totalorder %s108, %s109
      %p118 = scmp.eq.s32.totalorder %s23, 0
      %p119 = por %p117, %p118
      %p120 = scmp.ne.s32.totalorder %s108, %s109
      %p121 = scmp.eq.s32.totalorder %s24, 3
      %p122 = por %p120, %p121
      %p124 = scmp.ne.s32.totalorder %s109, %s123
      %p125 = scmp.eq.s32.totalorder %s24, 0
      %p126 = por %p124, %p125
      %s128 = sadd.s32 %s127, 1
      %p131 = scmp.eq.s32.totalorder %s18, 3
      %p132 = scmp.ne.s32.totalorder %s127, %s129
      %p133 = scmp.eq.s32.totalorder %s18, 0
      %p134 = por %p132, %p133
      %p135 = scmp.ne.s32.totalorder %s127, %s129
      %p136 = scmp.eq.s32.totalorder %s23, 3
      %p137 = por %p135, %p136
      %p138 = scmp.ne.s32.totalorder %s129, %s130
      %p139 = scmp.eq.s32.totalorder %s23, 0
      %p140 = por %p138, %p139
      %p141 = scmp.ne.s32.totalorder %s129, %s130
      %p142 = scmp.eq.s32.totalorder %s24, 3
      %p143 = por %p141, %p142
      %p145 = scmp.ne.s32.totalorder %s130, %s144
      %p146 = scmp.eq.s32.totalorder %s24, 0
      %p147 = por %p145, %p146
      %s149 = sadd.s32 %s148, 1
      %p152 = scmp.eq.s32.totalorder %s18, 3
      %p153 = scmp.ne.s32.totalorder %s148, %s150
      %p154 = scmp.eq.s32.totalorder %s18, 0
      %p155 = por %p153, %p154
      %p156 = scmp.ne.s32.totalorder %s148, %s150
      %p157 = scmp.eq.s32.totalorder %s23, 3
      %p158 = por %p156, %p157
      %p159 = scmp.ne.s32.totalorder %s150, %s151
      %p160 = scmp.eq.s32.totalorder %s23, 0
      %p161 = por %p159, %p160
      %p162 = scmp.ne.s32.totalorder %s150, %s151
      %p163 = scmp.eq.s32.totalorder %s24, 3
      %p164 = por %p162, %p163
      %p166 = scmp.ne.s32.totalorder %s151, %s165
      %p167 = scmp.eq.s32.totalorder %s24, 0
      %p168 = por %p166, %p167
      %s170 = sadd.s32 %s169, 1
      %p173 = scmp.eq.s32.totalorder %s18, 3
      %p174 = scmp.ne.s32.totalorder %s169, %s171
      %p175 = scmp.eq.s32.totalorder %s18, 0
      %p176 = por %p174, %p175
      %p177 = scmp.ne.s32.totalorder %s169, %s171
      %p178 = scmp.eq.s32.totalorder %s23, 3
      %p179 = por %p177, %p178
      %p180 = scmp.ne.s32.totalorder %s171, %s172
      %p181 = scmp.eq.s32.totalorder %s23, 0
      %p182 = por %p180, %p181
      %p183 = scmp.ne.s32.totalorder %s171, %s172
      %p184 = scmp.eq.s32.totalorder %s24, 3
      %p185 = por %p183, %p184
      %p187 = scmp.ne.s32.totalorder %s172, %s186
      %p188 = scmp.eq.s32.totalorder %s24, 0
      %p189 = por %p187, %p188
      %s190 = ssub.s32 %s25, %s37
      %p191 = scmp.eq.s32.totalorder %s190, 0
      %s193 = sadd.s32 %s192, 1
      %s194 = scalar_select %p191, %s192, %s193
      %p197 = pneg %p191
      %p198 = scmp.eq.s32.totalorder %s18, 3
      %p199 = por %p197, %p198
      %p200 = scmp.ne.s32.totalorder %s192, %s195
      %p201 = scmp.eq.s32.totalorder %s18, 0
      %p202 = por %p200, %p201
      %p203 = scmp.ne.s32.totalorder %s192, %s195
      %p204 = scmp.eq.s32.totalorder %s23, 3
      %p205 = por %p203, %p204
      %p206 = scmp.ne.s32.totalorder %s195, %s196
      %p207 = scmp.eq.s32.totalorder %s23, 0
      %p208 = por %p206, %p207
      %p209 = scmp.ne.s32.totalorder %s195, %s196
      %p210 = scmp.eq.s32.totalorder %s24, 3
      %p211 = por %p209, %p210
      %p213 = scmp.ne.s32.totalorder %s196, %s212
      %p214 = scmp.eq.s32.totalorder %s24, 0
      %p215 = por %p213, %p214
      %s216 = ssub.s32 %s25, %s37
      %s217 = ssub.s32 %s26, %s33
      %s218 = sor.u32 %s216, %s217
      %p219 = scmp.eq.s32.totalorder %s218, 0
      %s221 = sadd.s32 %s220, 1
      %s222 = scalar_select %p219, %s220, %s221
      %p225 = pneg %p219
      %p226 = scmp.eq.s32.totalorder %s18, 3
      %p227 = por %p225, %p226
      %p228 = scmp.ne.s32.totalorder %s220, %s223
      %p229 = scmp.eq.s32.totalorder %s18, 0
      %p230 = por %p228, %p229
      %p231 = scmp.ne.s32.totalorder %s220, %s223
      %p232 = scmp.eq.s32.totalorder %s23, 3
      %p233 = por %p231, %p232
      %p234 = scmp.ne.s32.totalorder %s223, %s224
      %p235 = scmp.eq.s32.totalorder %s23, 0
      %p236 = por %p234, %p235
      %p237 = scmp.ne.s32.totalorder %s223, %s224
      %p238 = scmp.eq.s32.totalorder %s24, 3
      %p239 = por %p237, %p238
      %p241 = scmp.ne.s32.totalorder %s224, %s240
      %p242 = scmp.eq.s32.totalorder %s24, 0
      %p243 = por %p241, %p242
      %p244 = scmp.le.s32.totalorder 1, %s18
      %p245 = scmp.lt.s32.totalorder %s18, 5
      %p246 = pnand %p244, %p245
      %p247 = pneg %p246
      // Predicated region
      $region9: #{self_attention_forward.1} parent=5 // pred_check
        _
      $region10: #{self_attention_forward.1} parent=5 // pred_check_branch
        %249 = sbr.rel (%p246) target = $region12
      $region11: #{self_attention_forward.1} parent=5 // pred_region
        %s250 = ssub.s32 %s18, 1
        // Predicated region
        $region13: #{self_attention_forward.1} parent=11 // pred_check
          %p251 = pneg %p77
        $region14: #{self_attention_forward.1} parent=11 // pred_check_branch
          %253 = sbr.rel (%p251) target = $region16
        $region15: #{self_attention_forward.1} parent=11 // pred_region
          _
        $region16: #{self_attention_forward.1} parent=11 // pred_fallthru
          _
        // Predicated region
        $region17: #{self_attention_forward.1} parent=11 // pred_check
          %p254 = pneg %p98
        $region18: #{self_attention_forward.1} parent=11 // pred_check_branch
          %256 = sbr.rel (%p254) target = $region20
        $region19: #{self_attention_forward.1} parent=11 // pred_region
          _
        $region20: #{self_attention_forward.1} parent=11 // pred_fallthru
          _
        // Predicated region
        $region21: #{self_attention_forward.1} parent=11 // pred_check
          %p257 = pneg %p119
        $region22: #{self_attention_forward.1} parent=11 // pred_check_branch
          %259 = sbr.rel (%p257) target = $region24
        $region23: #{self_attention_forward.1} parent=11 // pred_region
          _
        $region24: #{self_attention_forward.1} parent=11 // pred_fallthru
          _
        // Predicated region
        $region25: #{self_attention_forward.1} parent=11 // pred_check
          %p260 = pneg %p140
        $region26: #{self_attention_forward.1} parent=11 // pred_check_branch
          %262 = sbr.rel (%p260) target = $region28
        $region27: #{self_attention_forward.1} parent=11 // pred_region
          _
        $region28: #{self_attention_forward.1} parent=11 // pred_fallthru
          _
        // Predicated region
        $region29: #{self_attention_forward.1} parent=11 // pred_check
          %p263 = pneg %p161
        $region30: #{self_attention_forward.1} parent=11 // pred_check_branch
          %265 = sbr.rel (%p263) target = $region32
        $region31: #{self_attention_forward.1} parent=11 // pred_region
          _
        $region32: #{self_attention_forward.1} parent=11 // pred_fallthru
          _
        // Predicated region
        $region33: #{self_attention_forward.1} parent=11 // pred_check
          %p266 = pneg %p182
        $region34: #{self_attention_forward.1} parent=11 // pred_check_branch
          %268 = sbr.rel (%p266) target = $region36
        $region35: #{self_attention_forward.1} parent=11 // pred_region
          _
        $region36: #{self_attention_forward.1} parent=11 // pred_fallthru
          _
      $region12: #{self_attention_forward.1} parent=5 // pred_fallthru
        _
      %p269 = scmp.lt.s32.totalorder %s18, 4
      // Predicated region
      $region37: #{self_attention_forward.1} parent=5 // pred_check
        %p270 = pneg %p269
      $region38: #{self_attention_forward.1} parent=5 // pred_check_branch
        %272 = sbr.rel (%p270) target = $region40
      $region39: #{self_attention_forward.1} parent=5 // pred_region
        // Predicated region
        $region41: #{self_attention_forward.1} parent=39 // pred_check
          %p273 = pneg %p50
        $region42: #{self_attention_forward.1} parent=39 // pred_check_branch
          %275 = sbr.rel (%p273) target = $region44
        $region43: #{self_attention_forward.1} parent=39 // pred_region
          %p276 = scmp.lt.s32.totalorder %s25, 1
          %s277 = scalar_select %p276, %s25, 1
          %s278 = smul.addr %s277, 8
          %s279 = smul.addr %s278, 4
          %s280 = scalar_lea.vmem %s0, %s279
        $region44: #{self_attention_forward.1} parent=39 // pred_fallthru
          _
      $region40: #{self_attention_forward.1} parent=5 // pred_fallthru
        _
      %p281 = scmp.le.s32.totalorder 1, %s18
      %p282 = scmp.lt.s32.totalorder %s18, 5
      %p283 = pnand %p281, %p282
      %p284 = pneg %p283
      // Predicated region
      $region45: #{self_attention_forward.1} parent=5 // pred_check
        _
      $region46: #{self_attention_forward.1} parent=5 // pred_check_branch
        %286 = sbr.rel (%p283) target = $region48
      $region47: #{self_attention_forward.1} parent=5 // pred_region
        %s287 = ssub.s32 %s18, 1
        %p288 = scmp.lt.s32.totalorder %s27, 1
        %s289 = scalar_select %p288, %s27, 1
        %s290 = smul.addr %s289, 8
        %s291 = smul.addr %s290, 4
        %s292 = scalar_lea.vmem %s0, %s291
        %p293 = pneg %p56
        %p294 = pneg %p53
        %p295 = pneg %p77
        %p296 = pneg %p74
        %p297 = pneg %p98
        %p298 = pneg %p95
        %p299 = pneg %p119
        %p300 = pneg %p116
        %p301 = pneg %p140
        %p302 = pneg %p137
        %p303 = pneg %p161
        %p304 = pneg %p158
        %p305 = pneg %p182
        %p306 = pneg %p179
        %p307 = pneg %p208
        %p308 = pneg %p205
        %p309 = scmp.lt.s32.totalorder %s27, 1
        %s310 = scalar_select %p309, %s27, 1
        %s311 = smul.addr %s310, 8
        %s312 = smul.addr %s311, 8
        %s313 = scalar_lea.vmem %s7, %s312
        %p314 = pneg %p236
        %p315 = pneg %p233
        %s316 = sand.u32 %s223, 1
        %s317 = scalar_lea.sflag [#allocation5], %s316
        %s318 = sand.u32 %s223, 1
        %s319 = smul.addr %s318, 128
        %s320 = scalar_lea.vmem [#allocation4], %s319
        %p321 = scmp.lt.s32.totalorder %s27, 1
        %s322 = scalar_select %p321, %s27, 1
        %s323 = smul.addr %s322, 8
        %s324 = smul.addr %s323, 4
        %s325 = scalar_lea.vmem %s0, %s324
        %p326 = scmp.lt.s32.totalorder %s27, 1
        %s327 = scalar_select %p326, %s27, 1
        %s328 = smul.addr %s327, 8
        %s329 = smul.addr %s328, 8
        %s330 = scalar_lea.vmem %s7, %s329
        %s331 = smul.u32 16, %s28
        %p333 = scmp.eq.s32.totalorder %s28, 0
        // Predicated region
        $region49: #{self_attention_forward.1} parent=47 // pred_check
          %p334 = pneg %p333
        $region50: #{self_attention_forward.1} parent=47 // pred_check_branch
          %336 = sbr.rel (%p334) target = $region52
        $region51: #{self_attention_forward.1} parent=47 // pred_region
          %v337 = vld [vmem:[%s325] sm:$0xff]
          %v338 = vld [vmem:[%s325 + $0x8] sm:$0xff]
          %v339 = vld [vmem:[%s325 + $0x10] sm:$0xff]
          %v340 = vld [vmem:[%s325 + $0x18] sm:$0xff]
          %v341 = vld [vmem:[%s1] sm:$0x3]
          %v342 = vld [vmem:[%s2] sm:$0xf]
          %344 = vset.pattern.permute.xlu0 0
          %345 = vperm.xlu0 %344, %v342
          %v346 = vpop.permute.xlu0 %345
          %v352 = vunpack.c.l.b16 %v337
          %v353 = vunpack.c.h.b16 %v337
          %v354 = vunpack.c.l.b16 %v338
          %v355 = vunpack.c.h.b16 %v338
          %v356 = vunpack.c.l.b16 %v339
          %v357 = vunpack.c.h.b16 %v339
          %v358 = vunpack.c.l.b16 %v340
          %v359 = vunpack.c.h.b16 %v340
          %v360 = vpack.c.b16 %v354, %v352
          %v361 = vpack.c.b16 %v355, %v353
          %v362 = vpack.c.b16 %v358, %v356
          %v363 = vpack.c.b16 %v359, %v357
          %vm368 = vcmask 261120
          %v370 = vsel %vm368, %v341, 0
          %372 = vmatprep.subr.bf16.mxu0 %v361
          %373 = vmatpush1.bf16.msra.mxu0 %v360
          %374 = vmatprep.subr.bf16.mxu0 %v363
          %375 = vmatpush1.bf16.msra.mxu0 %v362
          %376 = vmatprep.subr.bf16.mxu0 0
          %377 = vmatpush1.bf16.msra.mxu0 0
          %378 = vmatprep.subr.bf16.mxu0 0
          %379 = vmatpush1.bf16.msra.mxu0 0
          %380 = vmatprep.subr.bf16.mxu0 0
          %381 = vmatpush1.bf16.msra.mxu0 0
          %382 = vmatprep.subr.bf16.mxu0 0
          %383 = vmatpush1.bf16.msra.mxu0 0
          %384 = vmatprep.subr.bf16.mxu0 0
          %385 = vmatpush1.bf16.msra.mxu0 0
          %386 = vmatprep.subr.bf16.mxu0 0
          %387 = vmatpush1.bf16.msra.mxu0 0
          %388 = vmatprep.subr.bf16.mxu0 0
          %389 = vmatpush1.bf16.msra.mxu0 0
          %390 = vmatprep.subr.bf16.mxu0 0
          %391 = vmatpush1.bf16.msra.mxu0 0
          %392 = vmatprep.subr.bf16.mxu0 0
          %393 = vmatpush1.bf16.msra.mxu0 0
          %394 = vmatprep.subr.bf16.mxu0 0
          %395 = vmatpush1.bf16.msra.mxu0 0
          %396 = vmatprep.subr.bf16.mxu0 0
          %397 = vmatpush1.bf16.msra.mxu0 0
          %398 = vmatprep.subr.bf16.mxu0 0
          %399 = vmatpush1.bf16.msra.mxu0 0
          %400 = vmatprep.subr.bf16.mxu0 0
          %401 = vmatpush1.bf16.msra.mxu0 0
          %402 = vmatprep.subr.bf16.mxu0 0
          %403 = vmatpush1.bf16.msra.mxu0 0
          %404 = vmatprep.mubr.bf16.mxu0 0
          %405 = vmatmul.mubr.bf16.gmra.mrb[0].mxu0 %v370
          %v406 = vpop.f32.mrb[0].mxu0
          %v407 = vadd.f32 %v346, %v406
          %v408 = vpop.f32.mrb[0].mxu0
          %v409 = vadd.f32 %v346, %v408
          %v410 = vpop.f32.mrb[0].mxu0
          %v411 = vpop.f32.mrb[0].mxu0
          %412 = vdwg.mxu0
          %v413 = vpack.c.bf16 %v407, %v407
          %v414 = vpack.c.bf16 %v409, %v409
          %v417 = vcombine.low %v413, %v414
          %v419 = vunpack.c.l.s4 1983009808
          %v420 = vunpack.c.0.s8 %v419
          %v421 = vlaneseq
          %v422 = vshrl.u32 %v421, 7
          %v423 = vsub.s32 %v420, %v422
          %v424 = vrot.slane %v417, %v423
          %426 = vst [vmem:[#allocation2] sm:$0xf] %v424
          %427 = vst [vmem:[#allocation3] sm:$0xff] 0.0
        $region52: #{self_attention_forward.1} parent=47 // pred_fallthru
          _
        %s428 = smul.u32 %s28, 128
        %s429 = sshra.s32 %s428, 7
        %s430 = sand.u32 %s428, 127
        %s431 = smul.addr %s429, 4
        %s432 = scalar_lea.vmem %s325, %s431
        %v433 = vld [vmem:[%s432] sm:$0xf]
        %v434 = vld [vmem:[%s432 + $0x8] sm:$0xf]
        %v435 = vld [vmem:[%s432 + $0x10] sm:$0xf]
        %v436 = vld [vmem:[%s432 + $0x18] sm:$0xf]
        %v437 = vld [vmem:[%s3] sm:$0xf]
        %v438 = vld [vmem:[%s4] sm:$0xff]
        %440 = vset.pattern.permute.xlu0 0
        %441 = vperm.xlu0 %440, %v438
        %v442 = vpop.permute.xlu0 %441
        %v448 = vunpack.c.l.b16 %v433
        %v449 = vunpack.c.l.b16 %v434
        %v450 = vunpack.c.l.b16 %v435
        %v451 = vunpack.c.l.b16 %v436
        %v452 = vpack.c.b16 %v449, %v448
        %v453 = vpack.c.b16 %v451, %v450
        %vm456 = vcmask 261120
        %v458 = vsel %vm456, %v437, 0
        %460 = vmatprep.subr.bf16.mxu0 0
        %461 = vmatpush1.bf16.msra.mxu0 %v452
        %462 = vmatprep.subr.bf16.mxu0 0
        %463 = vmatpush1.bf16.msra.mxu0 %v453
        %464 = vmatprep.subr.bf16.mxu0 0
        %465 = vmatpush1.bf16.msra.mxu0 0
        %466 = vmatprep.subr.bf16.mxu0 0
        %467 = vmatpush1.bf16.msra.mxu0 0
        %468 = vmatprep.subr.bf16.mxu0 0
        %469 = vmatpush1.bf16.msra.mxu0 0
        %470 = vmatprep.subr.bf16.mxu0 0
        %471 = vmatpush1.bf16.msra.mxu0 0
        %472 = vmatprep.subr.bf16.mxu0 0
        %473 = vmatpush1.bf16.msra.mxu0 0
        %474 = vmatprep.subr.bf16.mxu0 0
        %475 = vmatpush1.bf16.msra.mxu0 0
        %476 = vmatprep.subr.bf16.mxu0 0
        %477 = vmatpush1.bf16.msra.mxu0 0
        %478 = vmatprep.subr.bf16.mxu0 0
        %479 = vmatpush1.bf16.msra.mxu0 0
        %480 = vmatprep.subr.bf16.mxu0 0
        %481 = vmatpush1.bf16.msra.mxu0 0
        %482 = vmatprep.subr.bf16.mxu0 0
        %483 = vmatpush1.bf16.msra.mxu0 0
        %484 = vmatprep.subr.bf16.mxu0 0
        %485 = vmatpush1.bf16.msra.mxu0 0
        %486 = vmatprep.subr.bf16.mxu0 0
        %487 = vmatpush1.bf16.msra.mxu0 0
        %488 = vmatprep.subr.bf16.mxu0 0
        %489 = vmatpush1.bf16.msra.mxu0 0
        %490 = vmatprep.subr.bf16.mxu0 0
        %491 = vmatpush1.bf16.msra.mxu0 0
        %492 = vmatprep.mubr.bf16.mxu0 0
        %493 = vmatmul.mubr.bf16.gmra.mrb[0].mxu0 %v458
        %v494 = vpop.f32.mrb[0].mxu0
        %v495 = vadd.f32 %v442, %v494
        %v496 = vpop.f32.mrb[0].mxu0
        %v497 = vpop.f32.mrb[0].mxu0
        %v498 = vpop.f32.mrb[0].mxu0
        %499 = vdwg.mxu0
        %v500 = vpack.c.bf16 %v495, %v495
        %v501 = vld [vmem:[#allocation2] sm:$0xf]
        %502 = vxpose.xlu0.c.b16.start [1/8] %v500, 128
        %503 = vxpose.xlu0.c.b16.cont [2/8] 0, 128
        %504 = vxpose.xlu0.c.b16.cont [3/8] 0, 128
        %505 = vxpose.xlu0.c.b16.cont [4/8] 0, 128
        %506 = vxpose.xlu0.c.b16.cont [5/8] 0, 128
        %507 = vxpose.xlu0.c.b16.cont [6/8] 0, 128
        %508 = vxpose.xlu0.c.b16.cont [7/8] 0, 128
        %509 = vxpose.xlu0.c.b16.end [8/8] 0, 128
        %v510 = vpop.trf.xlu0
        %v511 = vpop.trf.xlu0
        %v512 = vpop.trf.xlu0
        %v513 = vpop.trf.xlu0
        %v514 = vpop.trf.xlu0
        %v515 = vpop.trf.xlu0
        %v516 = vpop.trf.xlu0
        %v517 = vpop.trf.xlu0
        %v520 = vunpack.c.l.s4 1983009808
        %v521 = vunpack.c.0.s8 %v520
        %v522 = vlaneseq
        %v523 = vshrl.u32 %v522, 7
        %v524 = vsub.s32 %v521, %v523
        %v525 = vrot.slane %v501, %v524
        %v526 = vcombine.high %v525, %v525
        %vm527 = vcmask 31744
        %v529 = vsel %vm527, %v510, 0
        %v532 = vsel %vm527, %v511, 0
        %v535 = vsel %vm527, %v512, 0
        %v538 = vsel %vm527, %v513, 0
        %v541 = vsel %vm527, %v514, 0
        %v544 = vsel %vm527, %v515, 0
        %v547 = vsel %vm527, %v516, 0
        %v550 = vsel %vm527, %v517, 0
        %vm552 = vcmask 1041408
        %v554 = vsel %vm552, %v525, 0
        %v557 = vsel %vm552, %v526, 0
        %559 = vmatprep.subr.bf16.mxu0 %v557
        %560 = vmatpush1.bf16.msra.mxu0 %v554
        %561 = vmatprep.subr.bf16.mxu0 0
        %562 = vmatpush1.bf16.msra.mxu0 0
        %563 = vmatprep.subr.bf16.mxu0 0
        %564 = vmatpush1.bf16.msra.mxu0 0
        %565 = vmatprep.subr.bf16.mxu0 0
        %566 = vmatpush1.bf16.msra.mxu0 0
        %567 = vmatprep.subr.bf16.mxu0 0
        %568 = vmatpush1.bf16.msra.mxu0 0
        %569 = vmatprep.subr.bf16.mxu0 0
        %570 = vmatpush1.bf16.msra.mxu0 0
        %571 = vmatprep.subr.bf16.mxu0 0
        %572 = vmatpush1.bf16.msra.mxu0 0
        %573 = vmatprep.subr.bf16.mxu0 0
        %574 = vmatpush1.bf16.msra.mxu0 0
        %575 = vmatprep.subr.bf16.mxu0 0
        %576 = vmatpush1.bf16.msra.mxu0 0
        %577 = vmatprep.subr.bf16.mxu0 0
        %578 = vmatpush1.bf16.msra.mxu0 0
        %579 = vmatprep.subr.bf16.mxu0 0
        %580 = vmatpush1.bf16.msra.mxu0 0
        %581 = vmatprep.subr.bf16.mxu0 0
        %582 = vmatpush1.bf16.msra.mxu0 0
        %583 = vmatprep.subr.bf16.mxu0 0
        %584 = vmatpush1.bf16.msra.mxu0 0
        %585 = vmatprep.subr.bf16.mxu0 0
        %586 = vmatpush1.bf16.msra.mxu0 0
        %587 = vmatprep.subr.bf16.mxu0 0
        %588 = vmatpush1.bf16.msra.mxu0 0
        %589 = vmatprep.subr.bf16.mxu0 0
        %590 = vmatpush1.bf16.msra.mxu0 0
        %591 = vmatprep.mubr.bf16.mxu0 0
        %592 = vmatmul.mubr.bf16.gmra.mrb[0].mxu0 %v529
        %v593 = vpop.f32.mrb[0].mxu0
        %v594 = vadd.f32 0.0, %v593
        %v595 = vpop.f32.mrb[0].mxu0
        %v596 = vadd.f32 0.0, %v595
        %v597 = vpop.f32.mrb[0].mxu0
        %v598 = vadd.f32 0.0, %v597
        %v599 = vpop.f32.mrb[0].mxu0
        %v600 = vadd.f32 0.0, %v599
        %601 = vmatprep.mubr.bf16.mxu0 0
        %602 = vmatmul.mubr.bf16.gmra.mrb[0].mxu0 %v532
        %v603 = vpop.f32.mrb[0].mxu0
        %v604 = vadd.f32 0.0, %v603
        %v605 = vpop.f32.mrb[0].mxu0
        %v606 = vadd.f32 0.0, %v605
        %v607 = vpop.f32.mrb[0].mxu0
        %v608 = vadd.f32 0.0, %v607
        %v609 = vpop.f32.mrb[0].mxu0
        %v610 = vadd.f32 0.0, %v609
        %611 = vmatprep.mubr.bf16.mxu0 0
        %612 = vmatmul.mubr.bf16.gmra.mrb[0].mxu0 %v535
        %v613 = vpop.f32.mrb[0].mxu0
        %v614 = vadd.f32 0.0, %v613
        %v615 = vpop.f32.mrb[0].mxu0
        %v616 = vadd.f32 0.0, %v615
        %v617 = vpop.f32.mrb[0].mxu0
        %v618 = vadd.f32 0.0, %v617
        %v619 = vpop.f32.mrb[0].mxu0
        %v620 = vadd.f32 0.0, %v619
        %621 = vmatprep.mubr.bf16.mxu0 0
        %622 = vmatmul.mubr.bf16.gmra.mrb[0].mxu0 %v538
        %v623 = vpop.f32.mrb[0].mxu0
        %v624 = vadd.f32 0.0, %v623
        %v625 = vpop.f32.mrb[0].mxu0
        %v626 = vadd.f32 0.0, %v625
        %v627 = vpop.f32.mrb[0].mxu0
        %v628 = vadd.f32 0.0, %v627
        %v629 = vpop.f32.mrb[0].mxu0
        %v630 = vadd.f32 0.0, %v629
        %631 = vmatprep.mubr.bf16.mxu0 0
        %632 = vmatmul.mubr.bf16.gmra.mrb[0].mxu0 %v541
        %v633 = vpop.f32.mrb[0].mxu0
        %v634 = vadd.f32 0.0, %v633
        %v635 = vpop.f32.mrb[0].mxu0
        %v636 = vadd.f32 0.0, %v635
        %v637 = vpop.f32.mrb[0].mxu0
        %v638 = vadd.f32 0.0, %v637
        %v639 = vpop.f32.mrb[0].mxu0
        %v640 = vadd.f32 0.0, %v639
        %641 = vmatprep.mubr.bf16.mxu0 0
        %642 = vmatmul.mubr.bf16.gmra.mrb[0].mxu0 %v544
        %v643 = vpop.f32.mrb[0].mxu0
        %v644 = vadd.f32 0.0, %v643
        %v645 = vpop.f32.mrb[0].mxu0
        %v646 = vadd.f32 0.0, %v645
        %v647 = vpop.f32.mrb[0].mxu0
        %v648 = vadd.f32 0.0, %v647
        %v649 = vpop.f32.mrb[0].mxu0
        %v650 = vadd.f32 0.0, %v649
        %651 = vmatprep.mubr.bf16.mxu0 0
        %652 = vmatmul.mubr.bf16.gmra.mrb[0].mxu0 %v547
        %v653 = vpop.f32.mrb[0].mxu0
        %v654 = vadd.f32 0.0, %v653
        %v655 = vpop.f32.mrb[0].mxu0
        %v656 = vadd.f32 0.0, %v655
        %v657 = vpop.f32.mrb[0].mxu0
        %v658 = vadd.f32 0.0, %v657
        %v659 = vpop.f32.mrb[0].mxu0
        %v660 = vadd.f32 0.0, %v659
        %661 = vmatprep.mubr.bf16.mxu0 0
        %662 = vmatmul.mubr.bf16.gmra.mrb[0].mxu0 %v550
        %v663 = vpop.f32.mrb[0].mxu0
        %v664 = vadd.f32 0.0, %v663
        %v665 = vpop.f32.mrb[0].mxu0
        %v666 = vadd.f32 0.0, %v665
        %v667 = vpop.f32.mrb[0].mxu0
        %v668 = vadd.f32 0.0, %v667
        %v669 = vpop.f32.mrb[0].mxu0
        %v670 = vadd.f32 0.0, %v669
        %671 = vdwg.mxu0
        %v672 = vmax.f32 %v594, %v596
        %673 = vmax.xlane.f32.xlu0 %v672
        %v674 = vpop.xlane.xlu0 %673
        %v675 = vmax.f32 %v598, %v600
        %676 = vmax.xlane.f32.xlu0 %v675
        %v677 = vpop.xlane.xlu0 %676
        %v678 = vmax.f32 %v604, %v606
        %679 = vmax.xlane.f32.xlu0 %v678
        %v680 = vpop.xlane.xlu0 %679
        %v681 = vmax.f32 %v608, %v610
        %682 = vmax.xlane.f32.xlu0 %v681
        %v683 = vpop.xlane.xlu0 %682
        %v684 = vmax.f32 %v614, %v616
        %685 = vmax.xlane.f32.xlu0 %v684
        %v686 = vpop.xlane.xlu0 %685
        %v687 = vmax.f32 %v618, %v620
        %688 = vmax.xlane.f32.xlu0 %v687
        %v689 = vpop.xlane.xlu0 %688
        %v690 = vmax.f32 %v624, %v626
        %691 = vmax.xlane.f32.xlu0 %v690
        %v692 = vpop.xlane.xlu0 %691
        %v693 = vmax.f32 %v628, %v630
        %694 = vmax.xlane.f32.xlu0 %v693
        %v695 = vpop.xlane.xlu0 %694
        %v696 = vmax.f32 %v634, %v636
        %697 = vmax.xlane.f32.xlu0 %v696
        %v698 = vpop.xlane.xlu0 %697
        %v699 = vmax.f32 %v638, %v640
        %700 = vmax.xlane.f32.xlu0 %v699
        %v701 = vpop.xlane.xlu0 %700
        %v702 = vmax.f32 %v644, %v646
        %703 = vmax.xlane.f32.xlu0 %v702
        %v704 = vpop.xlane.xlu0 %703
        %v705 = vmax.f32 %v648, %v650
        %706 = vmax.xlane.f32.xlu0 %v705
        %v707 = vpop.xlane.xlu0 %706
        %v708 = vmax.f32 %v654, %v656
        %709 = vmax.xlane.f32.xlu0 %v708
        %v710 = vpop.xlane.xlu0 %709
        %v711 = vmax.f32 %v658, %v660
        %712 = vmax.xlane.f32.xlu0 %v711
        %v713 = vpop.xlane.xlu0 %712
        %v714 = vmax.f32 %v664, %v666
        %715 = vmax.xlane.f32.xlu0 %v714
        %v716 = vpop.xlane.xlu0 %715
        %v717 = vmax.f32 %v668, %v670
        %718 = vmax.xlane.f32.xlu0 %v717
        %v719 = vpop.xlane.xlu0 %718
        %v720 = vsub.f32 %v594, %v674
        %v721 = vsub.f32 %v596, %v674
        %v722 = vsub.f32 %v598, %v677
        %v723 = vsub.f32 %v600, %v677
        %v724 = vsub.f32 %v604, %v680
        %v725 = vsub.f32 %v606, %v680
        %v726 = vsub.f32 %v608, %v683
        %v727 = vsub.f32 %v610, %v683
        %v728 = vsub.f32 %v614, %v686
        %v729 = vsub.f32 %v616, %v686
        %v730 = vsub.f32 %v618, %v689
        %v731 = vsub.f32 %v620, %v689
        %v732 = vsub.f32 %v624, %v692
        %v733 = vsub.f32 %v626, %v692
        %v734 = vsub.f32 %v628, %v695
        %v735 = vsub.f32 %v630, %v695
        %v736 = vsub.f32 %v634, %v698
        %v737 = vsub.f32 %v636, %v698
        %v738 = vsub.f32 %v638, %v701
        %v739 = vsub.f32 %v640, %v701
        %v740 = vsub.f32 %v644, %v704
        %v741 = vsub.f32 %v646, %v704
        %v742 = vsub.f32 %v648, %v707
        %v743 = vsub.f32 %v650, %v707
        %v744 = vsub.f32 %v654, %v710
        %v745 = vsub.f32 %v656, %v710
        %v746 = vsub.f32 %v658, %v713
        %v747 = vsub.f32 %v660, %v713
        %v748 = vsub.f32 %v664, %v716
        %v749 = vsub.f32 %v666, %v716
        %v750 = vsub.f32 %v668, %v719
        %v751 = vsub.f32 %v670, %v719
        %v752 = vmul.f32 %v720, 1.442695
        %v753 = vpow.pop %v752
        %v754 = vmul.f32 %v721, 1.442695
        %v755 = vpow.pop %v754
        %v756 = vmul.f32 %v722, 1.442695
        %v757 = vpow.pop %v756
        %v758 = vmul.f32 %v723, 1.442695
        %v759 = vpow.pop %v758
        %v760 = vmul.f32 %v724, 1.442695
        %v761 = vpow.pop %v760
        %v762 = vmul.f32 %v725, 1.442695
        %v763 = vpow.pop %v762
        %v764 = vmul.f32 %v726, 1.442695
        %v765 = vpow.pop %v764
        %v766 = vmul.f32 %v727, 1.442695
        %v767 = vpow.pop %v766
        %v768 = vmul.f32 %v728, 1.442695
        %v769 = vpow.pop %v768
        %v770 = vmul.f32 %v729, 1.442695
        %v771 = vpow.pop %v770
        %v772 = vmul.f32 %v730, 1.442695
        %v773 = vpow.pop %v772
        %v774 = vmul.f32 %v731, 1.442695
        %v775 = vpow.pop %v774
        %v776 = vmul.f32 %v732, 1.442695
        %v777 = vpow.pop %v776
        %v778 = vmul.f32 %v733, 1.442695
        %v779 = vpow.pop %v778
        %v780 = vmul.f32 %v734, 1.442695
        %v781 = vpow.pop %v780
        %v782 = vmul.f32 %v735, 1.442695
        %v783 = vpow.pop %v782
        %v784 = vmul.f32 %v736, 1.442695
        %v785 = vpow.pop %v784
        %v786 = vmul.f32 %v737, 1.442695
        %v787 = vpow.pop %v786
        %v788 = vmul.f32 %v738, 1.442695
        %v789 = vpow.pop %v788
        %v790 = vmul.f32 %v739, 1.442695
        %v791 = vpow.pop %v790
        %v792 = vmul.f32 %v740, 1.442695
        %v793 = vpow.pop %v792
        %v794 = vmul.f32 %v741, 1.442695
        %v795 = vpow.pop %v794
        %v796 = vmul.f32 %v742, 1.442695
        %v797 = vpow.pop %v796
        %v798 = vmul.f32 %v743, 1.442695
        %v799 = vpow.pop %v798
        %v800 = vmul.f32 %v744, 1.442695
        %v801 = vpow.pop %v800
        %v802 = vmul.f32 %v745, 1.442695
        %v803 = vpow.pop %v802
        %v804 = vmul.f32 %v746, 1.442695
        %v805 = vpow.pop %v804
        %v806 = vmul.f32 %v747, 1.442695
        %v807 = vpow.pop %v806
        %v808 = vmul.f32 %v748, 1.442695
        %v809 = vpow.pop %v808
        %v810 = vmul.f32 %v749, 1.442695
        %v811 = vpow.pop %v810
        %v812 = vmul.f32 %v750, 1.442695
        %v813 = vpow.pop %v812
        %v814 = vmul.f32 %v751, 1.442695
        %v815 = vpow.pop %v814
        %v816 = vadd.f32 %v753, %v755
        %817 = vadd.xlane.f32.xlu0 %v816
        %v818 = vpop.xlane.xlu0 %817
        %v819 = vadd.f32 %v757, %v759
        %820 = vadd.xlane.f32.xlu0 %v819
        %v821 = vpop.xlane.xlu0 %820
        %v822 = vadd.f32 %v761, %v763
        %823 = vadd.xlane.f32.xlu0 %v822
        %v824 = vpop.xlane.xlu0 %823
        %v825 = vadd.f32 %v765, %v767
        %826 = vadd.xlane.f32.xlu0 %v825
        %v827 = vpop.xlane.xlu0 %826
        %v828 = vadd.f32 %v769, %v771
        %829 = vadd.xlane.f32.xlu0 %v828
        %v830 = vpop.xlane.xlu0 %829
        %v831 = vadd.f32 %v773, %v775
        %832 = vadd.xlane.f32.xlu0 %v831
        %v833 = vpop.xlane.xlu0 %832
        %v834 = vadd.f32 %v777, %v779
        %835 = vadd.xlane.f32.xlu0 %v834
        %v836 = vpop.xlane.xlu0 %835
        %v837 = vadd.f32 %v781, %v783
        %838 = vadd.xlane.f32.xlu0 %v837
        %v839 = vpop.xlane.xlu0 %838
        %v840 = vadd.f32 %v785, %v787
        %841 = vadd.xlane.f32.xlu0 %v840
        %v842 = vpop.xlane.xlu0 %841
        %v843 = vadd.f32 %v789, %v791
        %844 = vadd.xlane.f32.xlu0 %v843
        %v845 = vpop.xlane.xlu0 %844
        %v846 = vadd.f32 %v793, %v795
        %847 = vadd.xlane.f32.xlu0 %v846
        %v848 = vpop.xlane.xlu0 %847
        %v849 = vadd.f32 %v797, %v799
        %850 = vadd.xlane.f32.xlu0 %v849
        %v851 = vpop.xlane.xlu0 %850
        %v852 = vadd.f32 %v801, %v803
        %853 = vadd.xlane.f32.xlu0 %v852
        %v854 = vpop.xlane.xlu0 %853
        %v855 = vadd.f32 %v805, %v807
        %856 = vadd.xlane.f32.xlu0 %v855
        %v857 = vpop.xlane.xlu0 %856
        %v858 = vadd.f32 %v809, %v811
        %859 = vadd.xlane.f32.xlu0 %v858
        %v860 = vpop.xlane.xlu0 %859
        %v861 = vadd.f32 %v813, %v815
        %862 = vadd.xlane.f32.xlu0 %v861
        %v863 = vpop.xlane.xlu0 %862
        %v864 = vrcp.pop %v818
        %v865 = vrcp.pop %v821
        %v866 = vrcp.pop %v824
        %v867 = vrcp.pop %v827
        %v868 = vrcp.pop %v830
        %v869 = vrcp.pop %v833
        %v870 = vrcp.pop %v836
        %v871 = vrcp.pop %v839
        %v872 = vrcp.pop %v842
        %v873 = vrcp.pop %v845
        %v874 = vrcp.pop %v848
        %v875 = vrcp.pop %v851
        %v876 = vrcp.pop %v854
        %v877 = vrcp.pop %v857
        %v878 = vrcp.pop %v860
        %v879 = vrcp.pop %v863
        %v880 = vmul.f32 %v753, %v864
        %v881 = vmul.f32 %v755, %v864
        %v882 = vmul.f32 %v757, %v865
        %v883 = vmul.f32 %v759, %v865
        %v884 = vmul.f32 %v761, %v866
        %v885 = vmul.f32 %v763, %v866
        %v886 = vmul.f32 %v765, %v867
        %v887 = vmul.f32 %v767, %v867
        %v888 = vmul.f32 %v769, %v868
        %v889 = vmul.f32 %v771, %v868
        %v890 = vmul.f32 %v773, %v869
        %v891 = vmul.f32 %v775, %v869
        %v892 = vmul.f32 %v777, %v870
        %v893 = vmul.f32 %v779, %v870
        %v894 = vmul.f32 %v781, %v871
        %v895 = vmul.f32 %v783, %v871
        %v896 = vmul.f32 %v785, %v872
        %v897 = vmul.f32 %v787, %v872
        %v898 = vmul.f32 %v789, %v873
        %v899 = vmul.f32 %v791, %v873
        %v900 = vmul.f32 %v793, %v874
        %v901 = vmul.f32 %v795, %v874
        %v902 = vmul.f32 %v797, %v875
        %v903 = vmul.f32 %v799, %v875
        %v904 = vmul.f32 %v801, %v876
        %v905 = vmul.f32 %v803, %v876
        %v906 = vmul.f32 %v805, %v877
        %v907 = vmul.f32 %v807, %v877
        %v908 = vmul.f32 %v809, %v878
        %v909 = vmul.f32 %v811, %v878
        %v910 = vmul.f32 %v813, %v879
        %v911 = vmul.f32 %v815, %v879
        %v912 = vpack.c.bf16 %v882, %v880
        %v913 = vpack.c.bf16 %v883, %v881
        %v914 = vpack.c.bf16 %v886, %v884
        %v915 = vpack.c.bf16 %v887, %v885
        %v916 = vpack.c.bf16 %v890, %v888
        %v917 = vpack.c.bf16 %v891, %v889
        %v918 = vpack.c.bf16 %v894, %v892
        %v919 = vpack.c.bf16 %v895, %v893
        %v920 = vpack.c.bf16 %v898, %v896
        %v921 = vpack.c.bf16 %v899, %v897
        %v922 = vpack.c.bf16 %v902, %v900
        %v923 = vpack.c.bf16 %v903, %v901
        %v924 = vpack.c.bf16 %v906, %v904
        %v925 = vpack.c.bf16 %v907, %v905
        %v926 = vpack.c.bf16 %v910, %v908
        %v927 = vpack.c.bf16 %v911, %v909
        %v944 = vunpack.c.l.b16 %v912
        %v945 = vunpack.c.l.b16 %v913
        %v946 = vunpack.c.h.b16 %v912
        %v947 = vunpack.c.h.b16 %v913
        %v948 = vunpack.c.l.b16 %v914
        %v949 = vunpack.c.l.b16 %v915
        %v950 = vunpack.c.h.b16 %v914
        %v951 = vunpack.c.h.b16 %v915
        %v952 = vunpack.c.l.b16 %v916
        %v953 = vunpack.c.l.b16 %v917
        %v954 = vunpack.c.h.b16 %v916
        %v955 = vunpack.c.h.b16 %v917
        %v956 = vunpack.c.l.b16 %v918
        %v957 = vunpack.c.l.b16 %v919
        %v958 = vunpack.c.h.b16 %v918
        %v959 = vunpack.c.h.b16 %v919
        %v960 = vunpack.c.l.b16 %v920
        %v961 = vunpack.c.l.b16 %v921
        %v962 = vunpack.c.h.b16 %v920
        %v963 = vunpack.c.h.b16 %v921
        %v964 = vunpack.c.l.b16 %v922
        %v965 = vunpack.c.l.b16 %v923
        %v966 = vunpack.c.h.b16 %v922
        %v967 = vunpack.c.h.b16 %v923
        %v968 = vunpack.c.l.b16 %v924
        %v969 = vunpack.c.l.b16 %v925
        %v970 = vunpack.c.h.b16 %v924
        %v971 = vunpack.c.h.b16 %v925
        %v972 = vunpack.c.l.b16 %v926
        %v973 = vunpack.c.l.b16 %v927
        %v974 = vunpack.c.h.b16 %v926
        %v975 = vunpack.c.h.b16 %v927
        %v976 = vpack.c.b16 %v945, %v944
        %v977 = vpack.c.b16 %v947, %v946
        %v978 = vpack.c.b16 %v949, %v948
        %v979 = vpack.c.b16 %v951, %v950
        %v980 = vpack.c.b16 %v953, %v952
        %v981 = vpack.c.b16 %v955, %v954
        %v982 = vpack.c.b16 %v957, %v956
        %v983 = vpack.c.b16 %v959, %v958
        %v984 = vpack.c.b16 %v961, %v960
        %v985 = vpack.c.b16 %v963, %v962
        %v986 = vpack.c.b16 %v965, %v964
        %v987 = vpack.c.b16 %v967, %v966
        %v988 = vpack.c.b16 %v969, %v968
        %v989 = vpack.c.b16 %v971, %v970
        %v990 = vpack.c.b16 %v973, %v972
        %v991 = vpack.c.b16 %v975, %v974
        %1008 = vst [vmem:[%s320] sm:$0xff] %v976
        %1009 = vst [vmem:[%s320 + $0x8] sm:$0xff] %v977
        %1010 = vst [vmem:[%s320 + $0x10] sm:$0xff] %v978
        %1011 = vst [vmem:[%s320 + $0x18] sm:$0xff] %v979
        %1012 = vst [vmem:[%s320 + $0x20] sm:$0xff] %v980
        %1013 = vst [vmem:[%s320 + $0x28] sm:$0xff] %v981
        %1014 = vst [vmem:[%s320 + $0x30] sm:$0xff] %v982
        %1015 = vst [vmem:[%s320 + $0x38] sm:$0xff] %v983
        %1016 = vst [vmem:[%s320 + $0x40] sm:$0xff] %v984
        %1017 = vst [vmem:[%s320 + $0x48] sm:$0xff] %v985
        %1018 = vst [vmem:[%s320 + $0x50] sm:$0xff] %v986
        %1019 = vst [vmem:[%s320 + $0x58] sm:$0xff] %v987
        %1020 = vst [vmem:[%s320 + $0x60] sm:$0xff] %v988
        %1021 = vst [vmem:[%s320 + $0x68] sm:$0xff] %v989
        %1022 = vst [vmem:[%s320 + $0x70] sm:$0xff] %v990
        %1023 = vst [vmem:[%s320 + $0x78] sm:$0xff] %v991
        %v1024 = vld [vmem:[#allocation3] sm:$0xff]
        %v1026 = vrot.slane %v500, 2
        %1028 = vmatprep.subr.bf16.mxu0 %v913
        %1029 = vmatpush1.bf16.msra.mxu0 %v912
        %1030 = vmatprep.subr.bf16.mxu0 %v915
        %1031 = vmatpush1.bf16.msra.mxu0 %v914
        %1032 = vmatprep.subr.bf16.mxu0 %v917
        %1033 = vmatpush1.bf16.msra.mxu0 %v916
        %1034 = vmatprep.subr.bf16.mxu0 %v919
        %1035 = vmatpush1.bf16.msra.mxu0 %v918
        %1036 = vmatprep.subr.bf16.mxu0 %v921
        %1037 = vmatpush1.bf16.msra.mxu0 %v920
        %1038 = vmatprep.subr.bf16.mxu0 %v923
        %1039 = vmatpush1.bf16.msra.mxu0 %v922
        %1040 = vmatprep.subr.bf16.mxu0 %v925
        %1041 = vmatpush1.bf16.msra.mxu0 %v924
        %1042 = vmatprep.subr.bf16.mxu0 %v927
        %1043 = vmatpush1.bf16.msra.mxu0 %v926
        %1044 = vmatprep.subr.bf16.mxu0 0
        %1045 = vmatpush1.bf16.msra.mxu0 0
        %1046 = vmatprep.subr.bf16.mxu0 0
        %1047 = vmatpush1.bf16.msra.mxu0 0
        %1048 = vmatprep.subr.bf16.mxu0 0
        %1049 = vmatpush1.bf16.msra.mxu0 0
        %1050 = vmatprep.subr.bf16.mxu0 0
        %1051 = vmatpush1.bf16.msra.mxu0 0
        %1052 = vmatprep.subr.bf16.mxu0 0
        %1053 = vmatpush1.bf16.msra.mxu0 0
        %1054 = vmatprep.subr.bf16.mxu0 0
        %1055 = vmatpush1.bf16.msra.mxu0 0
        %1056 = vmatprep.subr.bf16.mxu0 0
        %1057 = vmatpush1.bf16.msra.mxu0 0
        %1058 = vmatprep.subr.bf16.mxu0 0
        %1059 = vmatpush1.bf16.msra.mxu0 0
        %1060 = vmatprep.mubr.bf16.mxu0 0
        %1061 = vmatmul.mubr.bf16.gmra.mrb[0].mxu0 %v1026
        %v1062 = vpop.f32.mrb[0].mxu0
        %v1063 = vadd.f32 0.0, %v1062
        %v1064 = vpop.f32.mrb[0].mxu0
        %v1065 = vadd.f32 0.0, %v1064
        %v1066 = vpop.f32.mrb[0].mxu0
        %v1067 = vpop.f32.mrb[0].mxu0
        %1068 = vdwg.mxu0
        %v1071 = vcombine.low %v1063, %v1065
        %v1073 = vadd.f32 %v1024, %v1071
        %1074 = vst [vmem:[#allocation3] sm:$0xff] %v1073
        %p1075 = scmp.eq.s32.totalorder %s28, 1
        // Predicated region
        $region53: #{self_attention_forward.1} parent=47 // pred_check
          %p1076 = pneg %p1075
        $region54: #{self_attention_forward.1} parent=47 // pred_check_branch
          %1078 = sbr.rel (%p1076) target = $region56
        $region55: #{self_attention_forward.1} parent=47 // pred_region
          %v1079 = vld [vmem:[%s5] sm:$0xf]
          %v1080 = vld [vmem:[%s5 + $0x4] sm:$0xf]
          %v1081 = vld [vmem:[%s5 + $0x8] sm:$0xf]
          %v1082 = vld [vmem:[%s5 + $0xc] sm:$0xf]
          %v1083 = vld [vmem:[#allocation3] sm:$0xff]
          %v1085 = vcombine.high %v1083, %v1083
          %v1087 = vpack.c.bf16 %v1083, %v1083
          %v1088 = vpack.c.bf16 %v1085, %v1085
          %v1089 = vld [vmem:[%s6] sm:$0xff]
          %v1090 = vld [vmem:[%s6 + $0x8] sm:$0xff]
          %v1091 = vld [vmem:[%s6 + $0x10] sm:$0xff]
          %v1092 = vld [vmem:[%s6 + $0x18] sm:$0xff]
          %1094 = vset.pattern.permute.xlu0 0
          %1095 = vperm.xlu0 %1094, %v1089
          %v1096 = vpop.permute.xlu0 %1095
          %1099 = vset.pattern.permute.xlu0 0
          %1100 = vperm.xlu0 %1099, %v1090
          %v1101 = vpop.permute.xlu0 %1100
          %1104 = vset.pattern.permute.xlu0 0
          %1105 = vperm.xlu0 %1104, %v1091
          %v1106 = vpop.permute.xlu0 %1105
          %1109 = vset.pattern.permute.xlu0 0
          %1110 = vperm.xlu0 %1109, %v1092
          %v1111 = vpop.permute.xlu0 %1110
          %v1117 = vunpack.c.l.b16 %v1079
          %v1118 = vunpack.c.l.b16 %v1080
          %v1119 = vunpack.c.l.b16 %v1081
          %v1120 = vunpack.c.l.b16 %v1082
          %v1121 = vpack.c.b16 %v1118, %v1117
          %v1122 = vpack.c.b16 %v1120, %v1119
          %v1124 = vsel %vm527, %v1121, 0
          %v1127 = vsel %vm527, %v1122, 0
          %v1130 = vsel %vm552, %v1087, 0
          %v1133 = vsel %vm552, %v1088, 0
          %1135 = vmatprep.subr.bf16.mxu0 %v1133
          %1136 = vmatpush1.bf16.msra.mxu0 %v1130
          %1137 = vmatprep.subr.bf16.mxu0 0
          %1138 = vmatpush1.bf16.msra.mxu0 0
          %1139 = vmatprep.subr.bf16.mxu0 0
          %1140 = vmatpush1.bf16.msra.mxu0 0
          %1141 = vmatprep.subr.bf16.mxu0 0
          %1142 = vmatpush1.bf16.msra.mxu0 0
          %1143 = vmatprep.subr.bf16.mxu0 0
          %1144 = vmatpush1.bf16.msra.mxu0 0
          %1145 = vmatprep.subr.bf16.mxu0 0
          %1146 = vmatpush1.bf16.msra.mxu0 0
          %1147 = vmatprep.subr.bf16.mxu0 0
          %1148 = vmatpush1.bf16.msra.mxu0 0
          %1149 = vmatprep.subr.bf16.mxu0 0
          %1150 = vmatpush1.bf16.msra.mxu0 0
          %1151 = vmatprep.subr.bf16.mxu0 0
          %1152 = vmatpush1.bf16.msra.mxu0 0
          %1153 = vmatprep.subr.bf16.mxu0 0
          %1154 = vmatpush1.bf16.msra.mxu0 0
          %1155 = vmatprep.subr.bf16.mxu0 0
          %1156 = vmatpush1.bf16.msra.mxu0 0
          %1157 = vmatprep.subr.bf16.mxu0 0
          %1158 = vmatpush1.bf16.msra.mxu0 0
          %1159 = vmatprep.subr.bf16.mxu0 0
          %1160 = vmatpush1.bf16.msra.mxu0 0
          %1161 = vmatprep.subr.bf16.mxu0 0
          %1162 = vmatpush1.bf16.msra.mxu0 0
          %1163 = vmatprep.subr.bf16.mxu0 0
          %1164 = vmatpush1.bf16.msra.mxu0 0
          %1165 = vmatprep.subr.bf16.mxu0 0
          %1166 = vmatpush1.bf16.msra.mxu0 0
          %1167 = vmatprep.mubr.bf16.mxu0 0
          %1168 = vmatmul.mubr.bf16.gmra.mrb[0].mxu0 %v1124
          %v1169 = vpop.f32.mrb[0].mxu0
          %v1170 = vadd.f32 %v1096, %v1169
          %v1171 = vpop.f32.mrb[0].mxu0
          %v1172 = vadd.f32 %v1096, %v1171
          %v1173 = vpop.f32.mrb[0].mxu0
          %v1174 = vadd.f32 %v1101, %v1173
          %v1175 = vpop.f32.mrb[0].mxu0
          %v1176 = vadd.f32 %v1101, %v1175
          %1177 = vmatprep.mubr.bf16.mxu0 0
          %1178 = vmatmul.mubr.bf16.gmra.mrb[0].mxu0 %v1127
          %v1179 = vpop.f32.mrb[0].mxu0
          %v1180 = vadd.f32 %v1106, %v1179
          %v1181 = vpop.f32.mrb[0].mxu0
          %v1182 = vadd.f32 %v1106, %v1181
          %v1183 = vpop.f32.mrb[0].mxu0
          %v1184 = vadd.f32 %v1111, %v1183
          %v1185 = vpop.f32.mrb[0].mxu0
          %v1186 = vadd.f32 %v1111, %v1185
          %1187 = vdwg.mxu0
          %1188 = vst [vmem:[%s330] sm:$0xff] %v1170
          %1189 = vst [vmem:[%s330 + $0x8] sm:$0xff] %v1172
          %1190 = vst [vmem:[%s330 + $0x10] sm:$0xff] %v1174
          %1191 = vst [vmem:[%s330 + $0x18] sm:$0xff] %v1176
          %1192 = vst [vmem:[%s330 + $0x20] sm:$0xff] %v1180
          %1193 = vst [vmem:[%s330 + $0x28] sm:$0xff] %v1182
          %1194 = vst [vmem:[%s330 + $0x30] sm:$0xff] %v1184
          %1195 = vst [vmem:[%s330 + $0x38] sm:$0xff] %v1186
        $region56: #{self_attention_forward.1} parent=47 // pred_fallthru
          _
        %p1196 = scmp.lt.s32.totalorder %s27, 1
        %s1197 = scalar_select %p1196, %s27, 1
        %s1198 = smul.addr %s1197, 8
        %s1199 = smul.addr %s1198, 8
        %s1200 = scalar_lea.vmem %s7, %s1199
        %s1201 = sand.u32 %s223, 1
        %s1202 = scalar_lea.sflag [#allocation5], %s1201
        %s1203 = sand.u32 %s223, 1
        %s1204 = smul.addr %s1203, 128
        %s1205 = scalar_lea.vmem [#allocation4], %s1204
        // Predicated region
        $region57: #{self_attention_forward.1} parent=47 // pred_check
          %p1206 = pneg %p205
        $region58: #{self_attention_forward.1} parent=47 // pred_check_branch
          %1208 = sbr.rel (%p1206) target = $region60
        $region59: #{self_attention_forward.1} parent=47 // pred_region
          _
        $region60: #{self_attention_forward.1} parent=47 // pred_fallthru
          _
        // Predicated region
        $region61: #{self_attention_forward.1} parent=47 // pred_check
          %p1209 = pneg %p233
        $region62: #{self_attention_forward.1} parent=47 // pred_check_branch
          %1211 = sbr.rel (%p1209) target = $region64
        $region63: #{self_attention_forward.1} parent=47 // pred_region
          %s1212 = smul.u32 16, %s28
          %s1214 = ssub.s32 2048, 2048
          %1215 = vsyncadd %s1202, %s1214
          %s1216 = smul.addr %s1212, 2
          %s1217 = smul.addr %s27, 64
          %s1218 = sadd.s32 %s1216, %s1217
          %s1219 = smul.addr %s1218, 64
          %s1220 = scalar_lea.hbm %s8, %s1219
          %s1221 = sshll.u32 %s1205, 4
          %s1222 = int_to_ptr.vmem [resolvable:$true] %s1221
          %1227 = dma.vmem_to_hbm [thread:$0]  %s1222, 2048, %s1220, %s1202, 128, 128, 8
        $region64: #{self_attention_forward.1} parent=47 // pred_fallthru
          _
      $region48: #{self_attention_forward.1} parent=5 // pred_fallthru
        _
      %p1228 = scmp.le.s32.totalorder 2, %s18
      // Predicated region
      $region65: #{self_attention_forward.1} parent=5 // pred_check
        %p1229 = pneg %p1228
      $region66: #{self_attention_forward.1} parent=5 // pred_check_branch
        %1231 = sbr.rel (%p1229) target = $region68
      $region67: #{self_attention_forward.1} parent=5 // pred_region
        %s1232 = ssub.s32 %s18, 2
        // Predicated region
        $region69: #{self_attention_forward.1} parent=67 // pred_check
          %p1233 = pneg %p211
        $region70: #{self_attention_forward.1} parent=67 // pred_check_branch
          %1235 = sbr.rel (%p1233) target = $region72
        $region71: #{self_attention_forward.1} parent=67 // pred_region
          %p1236 = scmp.lt.s32.totalorder %s29, 1
          %s1237 = scalar_select %p1236, %s29, 1
          %s1238 = smul.addr %s1237, 8
          %s1239 = smul.addr %s1238, 8
          %s1240 = scalar_lea.vmem %s7, %s1239
        $region72: #{self_attention_forward.1} parent=67 // pred_fallthru
          _
        // Predicated region
        $region73: #{self_attention_forward.1} parent=67 // pred_check
          %p1241 = pneg %p239
        $region74: #{self_attention_forward.1} parent=67 // pred_check_branch
          %1243 = sbr.rel (%p1241) target = $region76
        $region75: #{self_attention_forward.1} parent=67 // pred_region
          %s1244 = sand.u32 %s224, 1
          %s1245 = scalar_lea.sflag [#allocation5], %s1244
          %s1246 = sand.u32 %s224, 1
          %s1247 = smul.addr %s1246, 128
          %s1248 = scalar_lea.vmem [#allocation4], %s1247
          %1249 = dma.done %s1245, 2048
        $region76: #{self_attention_forward.1} parent=67 // pred_fallthru
          _
      $region68: #{self_attention_forward.1} parent=5 // pred_fallthru
        _
    $region6: #{self_attention_forward.1} parent=1 // loop_footer
      %s22 = sadd.s32 1, %s18
    $region7: #{self_attention_forward.1} parent=1 // loop_footer_branch
      %17 = sbr.rel target = $region3
    $region8: #{self_attention_forward.1} parent=1 // loop_exit
      _
    %1250 = vsyncpa [#allocation5], 1
    %s1251 = scalar_lea.sflag [#allocation5], 1
    %1252 = vsyncpa %s1251, 1

</llo_original>
